<compile_context>
chip_gen: v6e
topology: v6e:2x2x1
jax: 0.10.0
libtpu: 0.0.40
codegen_flags: <defaults>
</compile_context>

<pallas_src>
import jax
import jax.numpy as jnp
from jax.experimental import pallas as pl
from jax.experimental.pallas import tpu as pltpu


def _relu_sigmoid_kernel(x_ref, o_ref):
    # x_ref block: (1, 2, TM, L); o_ref block: (1, TM, L)
    x0 = x_ref[0, 0, :, :].astype(jnp.float32)
    x1 = x_ref[0, 1, :, :].astype(jnp.float32)
    # sigmoid(x) == 0.5 * tanh(x / 2) + 0.5  -> single EUP op + fused mul/add.
    sig = 0.5 * jnp.tanh(0.5 * x1) + 0.5
    o_ref[0, :, :] = jnp.where(x0 < 0.0, -1.0, sig).astype(o_ref.dtype)


def _per_channel_block_elems():
    """f32 elements per channel per block.  Each grid step holds 2 input
    channels + 1 output channel; double-buffered that is 6 * elems * 4 bytes,
    kept under the default scoped-VMEM limit (16 MiB on <=v5, 32 MiB on
    v6e/v7x)."""
    try:
        kind = jax.devices()[0].device_kind.lower()
    except Exception:
        kind = "v5"  # unknown -> be conservative
    if any(t in kind for t in ("v2", "v3", "v4", "v5")):
        return 512 * 1024        # 2 MiB/channel -> ~12 MiB double-buffered
    return 1024 * 1024           # 4 MiB/channel -> ~24 MiB double-buffered (v6e/v7x)


def _launch(x4, rows, lane, tm):
    """x4: [B, C>=2, rows, lane] view; returns [B, rows, lane] float32."""
    B = x4.shape[0]
    grid = (B, pl.cdiv(rows, tm))
    return pl.pallas_call(
        _relu_sigmoid_kernel,
        out_shape=jax.ShapeDtypeStruct((B, rows, lane), jnp.float32),
        grid=grid,
        # Only channels 0..1 are ever DMA'd, regardless of C.
        in_specs=[pl.BlockSpec((1, 2, tm, lane), lambda b, t: (b, 0, t, 0))],
        out_specs=pl.BlockSpec((1, tm, lane), lambda b, t: (b, t, 0)),
        compiler_params=pltpu.CompilerParams(
            dimension_semantics=("parallel", "parallel")),
    )(x4)


def _pick_tm(rows, lane, B, budget_elems):
    """Row-tile: as big as the VMEM budget allows, then shrunk (to a multiple
    of 8) if that would leave fewer than ~4 grid steps, so v7x's two
    TensorCores both get work and the pipeline warms up.  Harmless on 1-TC
    chips."""
    tm_cap = max(8, (budget_elems // lane) // 8 * 8)
    tm = rows if rows <= tm_cap else tm_cap
    if B * pl.cdiv(rows, tm) < 4 and rows >= 16:
        want_tiles = min(pl.cdiv(4, B), rows // 8)
        if want_tiles > pl.cdiv(rows, tm):
            tm_new = ((pl.cdiv(rows, want_tiles) + 7) // 8) * 8
            tm = min(tm, max(8, tm_new))
    return tm


def relu_sigmoid(inputs):
    """inputs: [B, C>=2, H, W].  Returns [B, H, W] float32:
    -1 where inputs[:,0] < 0, else sigmoid(inputs[:,1])."""
    B, C, H, W = inputs.shape
    assert C >= 2, "ReLUSigmoid needs at least 2 channels"
    HW = H * W
    budget = _per_channel_block_elems()

    if HW % 128 == 0:
        # Lane-dense path: free (contiguous) view [B, C, rows, lane].
        lane = 128
        for cand in (2048, 1024, 512, 256):
            if HW % cand == 0:
                lane = cand
                break
        rows = HW // lane
        tm = _pick_tm(rows, lane, B, budget)
        out = _launch(inputs.reshape(B, C, rows, lane), rows, lane, tm)
        return out.reshape(B, H, W)

    # Ragged spatial size (H*W % 128 != 0): run directly on the native
    # [B, C, H, W] view.  Block dims equal to the full trailing dims are
    # exempt from the (8,128) rule, so there is no pad / output-slice copy.
    if HW <= budget:
        return _launch(inputs, H, W, H)
    if H >= 16 and W <= budget // 8:
        th = max(8, min(H, (budget // W) // 8 * 8))  # multiple of 8, < H
        return _launch(inputs, H, W, th)

    # Pathological ragged shape (tiny H with enormous W): fall back to a
    # padded lane-dense pass -- the only path that costs an extra HBM copy.
    x3 = inputs[:, :2].reshape(B, 2, HW)
    hw_pad = pl.cdiv(HW, 128) * 128
    x3 = jnp.pad(x3, ((0, 0), (0, 0), (0, hw_pad - HW)))
    rows = hw_pad // 128
    tm = _pick_tm(rows, 128, B, budget)
    out = _launch(x3.reshape(B, 2, rows, 128), rows, 128, tm)
    return out.reshape(B, hw_pad)[:, :HW].reshape(B, H, W)


def _reference(inputs):
    x0 = inputs[:, 0].astype(jnp.float32)
    x1 = inputs[:, 1].astype(jnp.float32)
    r = (x0 < 0).astype(jnp.float32)
    return -r + (1.0 - r) * jax.nn.sigmoid(x1)


if __name__ == "__main__":
    # Primary case: batch=2, channels=4 (module only consumes channels 0/1,
    # and only those are DMA'd), spatial 16x16 -> lane-dense path.
    x = jax.random.normal(jax.random.PRNGKey(0), (2, 4, 16, 16), dtype=jnp.float32)
    out = jax.block_until_ready(relu_sigmoid(x))
    ref = _reference(x)
    assert out.shape == ref.shape == (2, 16, 16)
    assert jnp.allclose(out, ref, atol=1e-5, rtol=1e-5)

    # Exact two-channel case.
    x1 = jax.random.normal(jax.random.PRNGKey(1), (2, 2, 16, 16), dtype=jnp.float32)
    out1 = jax.block_until_ready(relu_sigmoid(x1))
    assert jnp.allclose(out1, _reference(x1), atol=1e-5, rtol=1e-5)

    # Ragged spatial size (H*W not a multiple of 128): copy-free native path.
    x2 = jax.random.normal(jax.random.PRNGKey(2), (2, 3, 10, 12), dtype=jnp.float32)
    out2 = jax.block_until_ready(relu_sigmoid(x2))
    ref2 = _reference(x2)
    assert out2.shape == ref2.shape == (2, 10, 12)
    assert jnp.allclose(out2, ref2, atol=1e-5, rtol=1e-5)

    print("KERNEL_OK")
</pallas_src>

<mosaic_0001>
module attributes {stable_mosaic.version = 11 : i64} {
  func.func @_relu_sigmoid_kernel(%arg0: i32, %arg1: i32, %arg2: memref<1x2x1x256xf32, #tpu.memory_space<vmem>>, %arg3: memref<1x1x256xf32, #tpu.memory_space<vmem>>) attributes {dimension_semantics = [#tpu.dimension_semantics<parallel>, #tpu.dimension_semantics<parallel>], iteration_bounds = array<i64: 2, 1>, scalar_prefetch = 0 : i64, scratch_operands = 0 : i64, tpu.core_type = #tpu.core_type<tc>, window_params = [{transform_indices = @transform_0, window_bounds = array<i64: 1, 2, 1, 256>}, {transform_indices = @transform_1, window_bounds = array<i64: 1, 1, 256>}]} {
    %c0 = arith.constant 0 : index
    %c0_0 = arith.constant 0 : index
    %c0_1 = arith.constant 0 : index
    %c0_2 = arith.constant 0 : index
    %0 = vector.load %arg2[%c0, %c0_0, %c0_1, %c0_2] : memref<1x2x1x256xf32, #tpu.memory_space<vmem>>, vector<1x1x1x256xf32>
    %1 = vector.shape_cast %0 : vector<1x1x1x256xf32> to vector<1x256xf32>
    %c0_3 = arith.constant 0 : index
    %c1 = arith.constant 1 : index
    %c0_4 = arith.constant 0 : index
    %c0_5 = arith.constant 0 : index
    %2 = vector.load %arg2[%c0_3, %c1, %c0_4, %c0_5] : memref<1x2x1x256xf32, #tpu.memory_space<vmem>>, vector<1x1x1x256xf32>
    %3 = vector.shape_cast %2 : vector<1x1x1x256xf32> to vector<1x256xf32>
    %cst = arith.constant 5.000000e-01 : f32
    %4 = vector.broadcast %cst : f32 to vector<1x256xf32>
    %5 = arith.mulf %4, %3 : vector<1x256xf32>
    %6 = math.tanh %5 : vector<1x256xf32>
    %cst_6 = arith.constant 5.000000e-01 : f32
    %7 = vector.broadcast %cst_6 : f32 to vector<1x256xf32>
    %8 = arith.mulf %7, %6 : vector<1x256xf32>
    %cst_7 = arith.constant 5.000000e-01 : f32
    %9 = vector.broadcast %cst_7 : f32 to vector<1x256xf32>
    %10 = arith.addf %8, %9 : vector<1x256xf32>
    %cst_8 = arith.constant 0.000000e+00 : f32
    %11 = vector.broadcast %cst_8 : f32 to vector<1x256xf32>
    %12 = arith.cmpf olt, %1, %11 : vector<1x256xf32>
    %cst_9 = arith.constant -1.000000e+00 : f32
    %13 = vector.broadcast %cst_9 : f32 to vector<1x256xf32>
    %14 = arith.select %12, %13, %10 : vector<1x256xi1>, vector<1x256xf32>
    %c0_10 = arith.constant 0 : index
    %c0_11 = arith.constant 0 : index
    %c0_12 = arith.constant 0 : index
    %15 = vector.load %arg3[%c0_10, %c0_11, %c0_12] : memref<1x1x256xf32, #tpu.memory_space<vmem>>, vector<1x1x256xf32>
    %16 = vector.shape_cast %15 : vector<1x1x256xf32> to vector<1x256xf32>
    %17 = vector.shape_cast %14 : vector<1x256xf32> to vector<1x1x256xf32>
    tpu.vector_store %arg3[%c0_10, %c0_11, %c0_12], %17 {strides = array<i32>} : memref<1x1x256xf32, #tpu.memory_space<vmem>>, vector<1x1x256xf32>,
    return
  }
  func.func @transform_0(%arg0: i32, %arg1: i32) -> (i32, i32, i32, i32) {
    %c0_i32 = arith.constant 0 : i32
    %c0_i32_0 = arith.constant 0 : i32
    %c0_i32_1 = arith.constant 0 : i32
    return %arg0, %c0_i32, %arg1, %c0_i32_0 : i32, i32, i32, i32
  }
  func.func @transform_1(%arg0: i32, %arg1: i32) -> (i32, i32, i32) {
    %c0_i32 = arith.constant 0 : i32
    %c0_i32_0 = arith.constant 0 : i32
    return %arg0, %arg1, %c0_i32 : i32, i32, i32
  }
}

</mosaic_0001>

<llo_original>
// kernel: tpu_custom_call.1
$region0: #{tpu_custom_call.1}
  #allocation0 [shape = 'u32[]', space=smem, size = 0x4, offset = 0x4, fixed_abs, tag = 'smem constant byte address 0x4 - core index']
  #allocation1 [shape = 'u32[144,128]{1,0:T(1,128)}', space=vmem, size = 0x12000, scoped, tag = 'internal scratch']
  %s0 = inlined_call_operand.hbm [shape: f32[2,4,1,256], index: 0, kind: input, shape index: {}]
  %s1 = inlined_call_operand.hbm [shape: f32[2,1,256], index: 1, kind: output, shape index: {}]
  %s2 = sld [smem:[#allocation0]]
  $region41: #{tpu_custom_call.1} parent=0
    _
  %s4 = ssub.s32 1, %s2
  %s5 = scalar_select 0, %s4, %s2
  $region1: #{tpu_custom_call.1} parent=0
    #allocation2 [shape = 'u8[4096]{0}', space=vmem, size = 0x1000, scoped, tag = 'input window, operand 0']
    #allocation3 [shape = 's32[2]{0}', space=sflag, size = 0x8, scoped, tag = 'scoped memory for tpu_custom_call.1']
    #allocation4 [shape = 's32[2]{0}', space=sflag, size = 0x8, scoped, tag = 'scoped memory for tpu_custom_call.1']
    #allocation5 [shape = 'u8[2048]{0}', space=vmem, size = 0x800, scoped, tag = 'output window, operand 0']
    %6 = vsyncpa [#allocation3], 0
    %s7 = scalar_lea.sflag [#allocation3], 1
    %8 = vsyncpa %s7, 0
    %9 = vsyncpa [#allocation4], 0
    %s10 = scalar_lea.sflag [#allocation4], 1
    %11 = vsyncpa %s10, 0
    loop: start=0, step=1, limit=4
    $region2: #{tpu_custom_call.1} parent=1 // loop_pre_header
      _
    $region3: #{tpu_custom_call.1} parent=1 // loop_header
      %s13 = sphi 0, %s17
      %p14 = scmp.ge.s32.totalorder %s13, 4
      %s20 = sphi 0, %s32
      %s21 = sphi 0, %s28
      %s22 = sphi 0, %s20
      %s23 = sphi 0, %s21
      %s24 = sphi 0, %s22
      %s25 = sphi 0, %s23
      %s37 = sphi 0, %s39
      %s40 = sphi 0, %s37
      %s41 = sphi 0, %s40
      %s57 = sphi 0, %s41
      %s65 = sphi 0, %s67
      %s68 = sphi 0, %s65
      %s69 = sphi 0, %s68
      %s85 = sphi 0, %s69
    $region4: #{tpu_custom_call.1} parent=1 // loop_header_branch
      %16 = sbr.rel (%p14) target = $region8
    $region5: #{tpu_custom_call.1} parent=1 // loop_body
      %s18 = ssub.s32 %s13, 1
      %s19 = ssub.s32 %s13, 2
      %s26 = sadd.s32 1, %s21
      %p27 = scmp.ge.s32.totalorder %s26, 1
      %s28 = scalar_select %p27, 0, %s26
      %s29 = sadd.s32 1, %s20
      %s30 = scalar_select %p27, %s29, %s20
      %p31 = scmp.ge.s32.totalorder %s30, 2
      %s32 = scalar_select %p31, 0, %s30
      %s33 = ssub.s32 %s20, %s32
      %s34 = ssub.s32 %s21, %s28
      %s35 = sor.u32 %s33, %s34
      %p36 = scmp.eq.s32.totalorder %s35, 0
      %s38 = sadd.s32 %s37, 1
      %s39 = scalar_select %p36, %s37, %s38
      %p42 = pneg %p36
      %p43 = scmp.eq.s32.totalorder %s13, 1
      %p44 = por %p42, %p43
      %p45 = scmp.ne.s32.totalorder %s37, %s40
      %p46 = scmp.eq.s32.totalorder %s13, 0
      %p47 = por %p45, %p46
      %p48 = scmp.ne.s32.totalorder %s37, %s40
      %p49 = scmp.eq.s32.totalorder %s18, 1
      %p50 = por %p48, %p49
      %p51 = scmp.ne.s32.totalorder %s40, %s41
      %p52 = scmp.eq.s32.totalorder %s18, 0
      %p53 = por %p51, %p52
      %p54 = scmp.ne.s32.totalorder %s40, %s41
      %p55 = scmp.eq.s32.totalorder %s19, 1
      %p56 = por %p54, %p55
      %p58 = scmp.ne.s32.totalorder %s41, %s57
      %p59 = scmp.eq.s32.totalorder %s19, 0
      %p60 = por %p58, %p59
      %s61 = ssub.s32 %s20, %s32
      %s62 = ssub.s32 %s21, %s28
      %s63 = sor.u32 %s61, %s62
      %p64 = scmp.eq.s32.totalorder %s63, 0
      %s66 = sadd.s32 %s65, 1
      %s67 = scalar_select %p64, %s65, %s66
      %p70 = pneg %p64
      %p71 = scmp.eq.s32.totalorder %s13, 1
      %p72 = por %p70, %p71
      %p73 = scmp.ne.s32.totalorder %s65, %s68
      %p74 = scmp.eq.s32.totalorder %s13, 0
      %p75 = por %p73, %p74
      %p76 = scmp.ne.s32.totalorder %s65, %s68
      %p77 = scmp.eq.s32.totalorder %s18, 1
      %p78 = por %p76, %p77
      %p79 = scmp.ne.s32.totalorder %s68, %s69
      %p80 = scmp.eq.s32.totalorder %s18, 0
      %p81 = por %p79, %p80
      %p82 = scmp.ne.s32.totalorder %s68, %s69
      %p83 = scmp.eq.s32.totalorder %s19, 1
      %p84 = por %p82, %p83
      %p86 = scmp.ne.s32.totalorder %s69, %s85
      %p87 = scmp.eq.s32.totalorder %s19, 0
      %p88 = por %p86, %p87
      %p89 = scmp.le.s32.totalorder 1, %s13
      %p90 = scmp.lt.s32.totalorder %s13, 3
      %p91 = pnand %p89, %p90
      %p92 = pneg %p91
      // Predicated region
      $region9: #{tpu_custom_call.1} parent=5 // pred_check
        _
      $region10: #{tpu_custom_call.1} parent=5 // pred_check_branch
        %94 = sbr.rel (%p91) target = $region12
      $region11: #{tpu_custom_call.1} parent=5 // pred_region
        %s95 = ssub.s32 %s13, 1
      $region12: #{tpu_custom_call.1} parent=5 // pred_fallthru
        _
      %p96 = scmp.lt.s32.totalorder %s13, 2
      // Predicated region
      $region13: #{tpu_custom_call.1} parent=5 // pred_check
        %p97 = pneg %p96
      $region14: #{tpu_custom_call.1} parent=5 // pred_check_branch
        %99 = sbr.rel (%p97) target = $region16
      $region15: #{tpu_custom_call.1} parent=5 // pred_region
        // Predicated region
        $region17: #{tpu_custom_call.1} parent=15 // pred_check
          %p100 = pneg %p47
        $region18: #{tpu_custom_call.1} parent=15 // pred_check_branch
          %102 = sbr.rel (%p100) target = $region20
        $region19: #{tpu_custom_call.1} parent=15 // pred_region
          %s103 = sand.u32 %s37, 1
          %s104 = scalar_lea.sflag [#allocation3], %s103
          %s105 = sand.u32 %s37, 1
          %s106 = smul.addr %s105, 4
          %s107 = scalar_lea.vmem [#allocation2], %s106
          %s109 = ssub.s32 64, 64
          %110 = vsyncadd %s104, %s109
          %s111 = smul.addr %s21, 2
          %s112 = smul.addr %s20, 8
          %s113 = sadd.s32 %s111, %s112
          %s114 = smul.addr %s113, 16
          %s115 = scalar_lea.hbm %s0, %s114
          %s116 = sshll.u32 %s107, 4
          %s117 = int_to_ptr.vmem [resolvable:$true] %s116
          %122 = dma.hbm_to_vmem [thread:$0]  %s115, 64, %s117, %s104, 32, 32, 2
        $region20: #{tpu_custom_call.1} parent=15 // pred_fallthru
          _
      $region16: #{tpu_custom_call.1} parent=5 // pred_fallthru
        _
      %p123 = scmp.le.s32.totalorder 1, %s13
      %p124 = scmp.lt.s32.totalorder %s13, 3
      %p125 = pnand %p123, %p124
      %p126 = pneg %p125
      // Predicated region
      $region21: #{tpu_custom_call.1} parent=5 // pred_check
        _
      $region22: #{tpu_custom_call.1} parent=5 // pred_check_branch
        %128 = sbr.rel (%p125) target = $region24
      $region23: #{tpu_custom_call.1} parent=5 // pred_region
        %s129 = ssub.s32 %s13, 1
        %s130 = sand.u32 %s40, 1
        %s131 = scalar_lea.sflag [#allocation3], %s130
        %s132 = sand.u32 %s40, 1
        %s133 = smul.addr %s132, 4
        %s134 = scalar_lea.vmem [#allocation2], %s133
        // Predicated region
        $region25: #{tpu_custom_call.1} parent=23 // pred_check
          %p135 = pneg %p53
        $region26: #{tpu_custom_call.1} parent=23 // pred_check_branch
          %137 = sbr.rel (%p135) target = $region28
        $region27: #{tpu_custom_call.1} parent=23 // pred_region
          %138 = dma.done %s131, 64
        $region28: #{tpu_custom_call.1} parent=23 // pred_fallthru
          _
        %s139 = sand.u32 %s40, 1
        %s140 = scalar_lea.sflag [#allocation3], %s139
        %s141 = sand.u32 %s40, 1
        %s142 = smul.addr %s141, 4
        %s143 = scalar_lea.vmem [#allocation2], %s142
        %p144 = pneg %p53
        %p145 = pneg %p50
        %p146 = pneg %p81
        %p147 = pneg %p78
        %s148 = sand.u32 %s68, 1
        %s149 = scalar_lea.sflag [#allocation4], %s148
        %s150 = sand.u32 %s68, 1
        %s151 = smul.addr %s150, 2
        %s152 = scalar_lea.vmem [#allocation5], %s151
        %v153 = vld [vmem:[%s134] sm:$0x3]
        %s154 = scalar_lea.vmem %s134, 2 [#allocation2]
        %v155 = vld [vmem:[%s154] sm:$0x3]
        %v156 = vmul.f32 %v155, 0.5
        %v157 = vtanh.pop %v156
        %v158 = vmul.f32 %v157, 0.5
        %v159 = vadd.f32 %v158, 0.5
        %vm160 = vcmp.lt.f32.partialorder %v153, 0.0
        %v161 = vsel %vm160, -1.0, %v159
        %v162 = vlaneseq
        %vm163 = vcmp.ge.s32.totalorder %v162, 0
        %vm164 = vcmp.lt.s32.totalorder %v162, 256
        %vm165 = vmand %vm163, %vm164
        %166 = vst.msk [vmem:[%s152] sm:$0x3] %vm165, %v161
        %s167 = sand.u32 %s68, 1
        %s168 = scalar_lea.sflag [#allocation4], %s167
        %s169 = sand.u32 %s68, 1
        %s170 = smul.addr %s169, 2
        %s171 = scalar_lea.vmem [#allocation5], %s170
        // Predicated region
        $region29: #{tpu_custom_call.1} parent=23 // pred_check
          %p172 = pneg %p78
        $region30: #{tpu_custom_call.1} parent=23 // pred_check_branch
          %174 = sbr.rel (%p172) target = $region32
        $region31: #{tpu_custom_call.1} parent=23 // pred_region
          %s176 = ssub.s32 32, 32
          %177 = vsyncadd %s168, %s176
          %s178 = smul.addr %s23, 2
          %s179 = smul.addr %s22, 2
          %s180 = sadd.s32 %s178, %s179
          %s181 = smul.addr %s180, 16
          %s182 = scalar_lea.hbm %s1, %s181
          %s184 = sshll.u32 %s171, 4
          %s185 = int_to_ptr.vmem [resolvable:$true] %s184
          %187 = dma.vmem_to_hbm [thread:$0]  %s185, 32, %s182, %s168
        $region32: #{tpu_custom_call.1} parent=23 // pred_fallthru
          _
      $region24: #{tpu_custom_call.1} parent=5 // pred_fallthru
        _
      %p188 = scmp.le.s32.totalorder 2, %s13
      // Predicated region
      $region33: #{tpu_custom_call.1} parent=5 // pred_check
        %p189 = pneg %p188
      $region34: #{tpu_custom_call.1} parent=5 // pred_check_branch
        %191 = sbr.rel (%p189) target = $region36
      $region35: #{tpu_custom_call.1} parent=5 // pred_region
        %s192 = ssub.s32 %s13, 2
        // Predicated region
        $region37: #{tpu_custom_call.1} parent=35 // pred_check
          %p193 = pneg %p84
        $region38: #{tpu_custom_call.1} parent=35 // pred_check_branch
          %195 = sbr.rel (%p193) target = $region40
        $region39: #{tpu_custom_call.1} parent=35 // pred_region
          %s196 = sand.u32 %s69, 1
          %s197 = scalar_lea.sflag [#allocation4], %s196
          %s198 = sand.u32 %s69, 1
          %s199 = smul.addr %s198, 2
          %s200 = scalar_lea.vmem [#allocation5], %s199
          %201 = dma.done %s197, 32
        $region40: #{tpu_custom_call.1} parent=35 // pred_fallthru
          _
      $region36: #{tpu_custom_call.1} parent=5 // pred_fallthru
        _
    $region6: #{tpu_custom_call.1} parent=1 // loop_footer
      %s17 = sadd.s32 1, %s13
    $region7: #{tpu_custom_call.1} parent=1 // loop_footer_branch
      %12 = sbr.rel target = $region3
    $region8: #{tpu_custom_call.1} parent=1 // loop_exit
      _
    %202 = vsyncpa [#allocation3], 1
    %s203 = scalar_lea.sflag [#allocation3], 1
    %204 = vsyncpa %s203, 1
    %205 = vsyncpa [#allocation4], 1
    %s206 = scalar_lea.sflag [#allocation4], 1
    %207 = vsyncpa %s206, 1

</llo_original>
